<compile_context>
chip_gen: v6e
topology: v6e:2x2x1
jax: 0.10.0
libtpu: 0.0.40
codegen_flags: <defaults>
</compile_context>

<pallas_src>
import jax
import jax.numpy as jnp
from jax.experimental import pallas as pl
from jax.experimental.pallas import tpu as pltpu

_LANE = 128      # vreg lane width
_SUBLANE = 8     # vreg sublane width


def _round_up(a: int, b: int) -> int:
    return pl.cdiv(a, b) * b


def _sigmoid(z):
    # exp -> EUP, approximate reciprocal -> EUP (vrcp); no VALU Newton steps.
    return pl.reciprocal(1.0 + jnp.exp(-z), approx=True)


def autoencoder_kernel(x_ref, wg_ref, bg_ref, wh_ref, bh_ref, out_ref):
    """One batch tile of:
        latent  = sigmoid(x @ Wg^T + bg)
        decoded = sigmoid(latent @ Wh^T + bh)

    Weights arrive already transposed/padded: wg_ref is (Np, Kp), wh_ref is
    (Kp, Np), both bf16.  Matmuls run on the MXU with f32 accumulation; bias
    add + sigmoid stay in f32 (v5e VPU/EUP has no bf16 path).
    """
    x = x_ref[...]                                              # (TB, Np) bf16
    z1 = jnp.dot(x, wg_ref[...],
                 preferred_element_type=jnp.float32)            # (TB, Kp) f32
    latent = _sigmoid(z1 + bg_ref[...])                         # (TB, Kp) f32
    # Padded Kp rows of wh are zero, so the sigmoid(0)=0.5 padded latent lanes
    # contribute exactly 0 to the decoder output.
    z2 = jnp.dot(latent.astype(jnp.bfloat16), wh_ref[...],
                 preferred_element_type=jnp.float32)            # (TB, Np) f32
    out_ref[...] = _sigmoid(z2 + bh_ref[...]).astype(out_ref.dtype)


def _choose_batch_tile(B: int, block_b: int, min_steps: int = 4) -> int:
    """Pick a batch tile: as large as possible, but keep >=min_steps grid
    steps for small batches so double buffering / the v7x parallel split still
    have >=2 steps per TensorCore."""
    Bp = _round_up(B, _SUBLANE)
    if Bp >= block_b * min_steps:
        return block_b
    tb = _round_up(pl.cdiv(Bp, min_steps), _SUBLANE)
    return max(_SUBLANE, min(tb, block_b))


def autoencoder_forward(x, g_weight, g_bias, h_weight, h_bias, *, block_b=1024):
    """
    x:        (B, num_students) float32
    g_weight: (k, num_students)  -- nn.Linear(num_students, k).weight (PyTorch layout)
    g_bias:   (k,)
    h_weight: (num_students, k)  -- nn.Linear(k, num_students).weight
    h_bias:   (num_students,)
    returns:  (B, num_students) float32
    """
    B, N = x.shape
    K = g_weight.shape[0]

    # --- Pad both feature dims to full 128-lane width (full unmasked stores).
    Np = max(_LANE, _round_up(N, _LANE))
    Kp = max(_LANE, _round_up(K, _LANE))

    # One-time wrapper-side transpose + zero-pad of the weights (bf16).
    wg_t = jnp.pad(g_weight.T, ((0, Np - N), (0, Kp - K))).astype(jnp.bfloat16)  # (Np, Kp)
    wh_t = jnp.pad(h_weight.T, ((0, Kp - K), (0, Np - N))).astype(jnp.bfloat16)  # (Kp, Np)
    bg_p = jnp.pad(g_bias, (0, Kp - K)).reshape(1, Kp).astype(jnp.float32)       # (1, Kp)
    bh_p = jnp.pad(h_bias, (0, Np - N)).reshape(1, Np).astype(jnp.float32)       # (1, Np)

    # --- Batch tiling: TB-row tiles, bf16 x stream (cast fused with the pad).
    TB = _choose_batch_tile(B, block_b)
    Bp = _round_up(B, TB)
    x_p = jnp.pad(x, ((0, Bp - B), (0, Np - N))).astype(jnp.bfloat16)            # (Bp, Np)
    grid = (Bp // TB,)

    cost = pl.CostEstimate(
        flops=4 * Bp * Np * Kp,                  # two matmuls, 2*B*Np*Kp flops each
        transcendentals=2 * Bp * (Kp + Np),      # exp + reciprocal per sigmoid element
        bytes_accessed=(Bp * Np * 2              # x in (bf16)
                        + Bp * Np * 4            # out (f32)
                        + 2 * Np * Kp * 2        # bf16 weights
                        + Kp * 4 + Np * 4),      # biases
    )

    out_p = pl.pallas_call(
        autoencoder_kernel,
        out_shape=jax.ShapeDtypeStruct((Bp, Np), jnp.float32),
        grid=grid,
        in_specs=[
            pl.BlockSpec((TB, Np), lambda i: (i, 0)),   # x: streamed per batch tile
            pl.BlockSpec((Np, Kp), lambda i: (0, 0)),   # Wg^T: resident (constant block)
            pl.BlockSpec((1, Kp), lambda i: (0, 0)),    # bg: resident
            pl.BlockSpec((Kp, Np), lambda i: (0, 0)),   # Wh^T: resident
            pl.BlockSpec((1, Np), lambda i: (0, 0)),    # bh: resident
        ],
        out_specs=pl.BlockSpec((TB, Np), lambda i: (i, 0)),
        compiler_params=pltpu.CompilerParams(
            dimension_semantics=("parallel",),          # batch tiles shard across TCs (v7x)
        ),
        cost_estimate=cost,
    )(x_p, wg_t, bg_p, wh_t, bh_p)

    return out_p[:B, :N]


def reference_forward(x, g_weight, g_bias, h_weight, h_bias):
    latent = jax.nn.sigmoid(x @ g_weight.T + g_bias)
    return jax.nn.sigmoid(latent @ h_weight.T + h_bias)


if __name__ == "__main__":
    # Shapes consistent with the module: num_students=128, k=32, batch=256.
    # batch=256 -> 4 grid steps of 64 rows (>=2 per TensorCore on v7x).
    num_students = 128
    k = 32
    batch = 256

    key = jax.random.PRNGKey(0)
    kx, kgw, kgb, khw, khb = jax.random.split(key, 5)

    # Deterministic init mirroring PyTorch nn.Linear default: U(-1/sqrt(fan_in), 1/sqrt(fan_in))
    g_bound = 1.0 / jnp.sqrt(jnp.float32(num_students))
    h_bound = 1.0 / jnp.sqrt(jnp.float32(k))

    x = jax.random.normal(kx, (batch, num_students), dtype=jnp.float32)
    g_weight = jax.random.uniform(kgw, (k, num_students), jnp.float32, -g_bound, g_bound)
    g_bias = jax.random.uniform(kgb, (k,), jnp.float32, -g_bound, g_bound)
    h_weight = jax.random.uniform(khw, (num_students, k), jnp.float32, -h_bound, h_bound)
    h_bias = jax.random.uniform(khb, (num_students,), jnp.float32, -h_bound, h_bound)

    out = jax.block_until_ready(
        autoencoder_forward(x, g_weight, g_bias, h_weight, h_bias))

    ref = reference_forward(x, g_weight, g_bias, h_weight, h_bias)
    assert out.shape == (batch, num_students)
    # bf16 matmul inputs + approximate EUP reciprocal -> relaxed tolerance vs f32 ref.
    assert jnp.allclose(out, ref, atol=3e-2, rtol=3e-2), "mismatch vs reference"

    print("KERNEL_OK")
</pallas_src>

<mosaic_0001>
module attributes {stable_mosaic.version = 11 : i64} {
  func.func @autoencoder_kernel(%arg0: i32, %arg1: memref<64x128xbf16, #tpu.memory_space<vmem>>, %arg2: memref<128x128xbf16, #tpu.memory_space<vmem>>, %arg3: memref<1x128xf32, #tpu.memory_space<vmem>>, %arg4: memref<128x128xbf16, #tpu.memory_space<vmem>>, %arg5: memref<1x128xf32, #tpu.memory_space<vmem>>, %arg6: memref<64x128xf32, #tpu.memory_space<vmem>>) attributes {dimension_semantics = [#tpu.dimension_semantics<parallel>], iteration_bounds = array<i64: 4>, scalar_prefetch = 0 : i64, scratch_operands = 0 : i64, tpu.core_type = #tpu.core_type<tc>, window_params = [{transform_indices = @transform_0, window_bounds = array<i64: 64, 128>}, {pipeline_mode = #tpu.pipeline_mode<synchronous>, transform_indices = @transform_1, window_bounds = array<i64: 128, 128>}, {pipeline_mode = #tpu.pipeline_mode<synchronous>, transform_indices = @transform_2, window_bounds = array<i64: 1, 128>}, {pipeline_mode = #tpu.pipeline_mode<synchronous>, transform_indices = @transform_3, window_bounds = array<i64: 128, 128>}, {pipeline_mode = #tpu.pipeline_mode<synchronous>, transform_indices = @transform_4, window_bounds = array<i64: 1, 128>}, {transform_indices = @transform_5, window_bounds = array<i64: 64, 128>}]} {
    %c0 = arith.constant 0 : index
    %c0_0 = arith.constant 0 : index
    %0 = vector.load %arg1[%c0, %c0_0] : memref<64x128xbf16, #tpu.memory_space<vmem>>, vector<64x128xbf16>
    %c0_1 = arith.constant 0 : index
    %c0_2 = arith.constant 0 : index
    %1 = vector.load %arg2[%c0_1, %c0_2] : memref<128x128xbf16, #tpu.memory_space<vmem>>, vector<128x128xbf16>
    %cst = arith.constant dense<0.000000e+00> : vector<64x128xf32>
    %2 = tpu.matmul %0, %1, %cst {dimension_numbers = #tpu.dot_dimension_numbers<[1], [0], [0], [1], [0, 0, 1, 1], [], []>} : vector<64x128xbf16>, vector<128x128xbf16>, vector<64x128xf32> -> vector<64x128xf32>
    %c0_3 = arith.constant 0 : index
    %c0_4 = arith.constant 0 : index
    %3 = vector.load %arg3[%c0_3, %c0_4] : memref<1x128xf32, #tpu.memory_space<vmem>>, vector<1x128xf32>
    %4 = vector.broadcast %3 : vector<1x128xf32> to vector<64x128xf32>
    %5 = arith.addf %2, %4 : vector<64x128xf32>
    %cst_5 = arith.constant 0.000000e+00 : f32
    %6 = vector.broadcast %cst_5 : f32 to vector<64x128xf32>
    %7 = arith.subf %6, %5 : vector<64x128xf32>
    %8 = math.exp %7 : vector<64x128xf32>
    %cst_6 = arith.constant 1.000000e+00 : f32
    %9 = vector.broadcast %cst_6 : f32 to vector<64x128xf32>
    %10 = arith.addf %9, %8 : vector<64x128xf32>
    %11 = tpu.reciprocal %10 {approx = true} : vector<64x128xf32> -> vector<64x128xf32>
    %12 = arith.truncf %11 : vector<64x128xf32> to vector<64x128xbf16>
    %c0_7 = arith.constant 0 : index
    %c0_8 = arith.constant 0 : index
    %13 = vector.load %arg4[%c0_7, %c0_8] : memref<128x128xbf16, #tpu.memory_space<vmem>>, vector<128x128xbf16>
    %cst_9 = arith.constant dense<0.000000e+00> : vector<64x128xf32>
    %14 = tpu.matmul %12, %13, %cst_9 {dimension_numbers = #tpu.dot_dimension_numbers<[1], [0], [0], [1], [0, 0, 1, 1], [], []>} : vector<64x128xbf16>, vector<128x128xbf16>, vector<64x128xf32> -> vector<64x128xf32>
    %c0_10 = arith.constant 0 : index
    %c0_11 = arith.constant 0 : index
    %15 = vector.load %arg5[%c0_10, %c0_11] : memref<1x128xf32, #tpu.memory_space<vmem>>, vector<1x128xf32>
    %16 = vector.broadcast %15 : vector<1x128xf32> to vector<64x128xf32>
    %17 = arith.addf %14, %16 : vector<64x128xf32>
    %cst_12 = arith.constant 0.000000e+00 : f32
    %18 = vector.broadcast %cst_12 : f32 to vector<64x128xf32>
    %19 = arith.subf %18, %17 : vector<64x128xf32>
    %20 = math.exp %19 : vector<64x128xf32>
    %cst_13 = arith.constant 1.000000e+00 : f32
    %21 = vector.broadcast %cst_13 : f32 to vector<64x128xf32>
    %22 = arith.addf %21, %20 : vector<64x128xf32>
    %23 = tpu.reciprocal %22 {approx = true} : vector<64x128xf32> -> vector<64x128xf32>
    %c0_14 = arith.constant 0 : index
    %c0_15 = arith.constant 0 : index
    %24 = vector.load %arg6[%c0_14, %c0_15] : memref<64x128xf32, #tpu.memory_space<vmem>>, vector<64x128xf32>
    tpu.vector_store %arg6[%c0_14, %c0_15], %23 {strides = array<i32>} : memref<64x128xf32, #tpu.memory_space<vmem>>, vector<64x128xf32>,
    return
  }
  func.func @transform_0(%arg0: i32) -> (i32, i32) {
    %c0_i32 = arith.constant 0 : i32
    %c0_i32_0 = arith.constant 0 : i32
    return %arg0, %c0_i32 : i32, i32
  }
  func.func @transform_1(%arg0: i32) -> (i32, i32) {
    %c0_i32 = arith.constant 0 : i32
    %c0_i32_0 = arith.constant 0 : i32
    %c0_i32_1 = arith.constant 0 : i32
    return %c0_i32, %c0_i32_0 : i32, i32
  }
  func.func @transform_2(%arg0: i32) -> (i32, i32) {
    %c0_i32 = arith.constant 0 : i32
    %c0_i32_0 = arith.constant 0 : i32
    %c0_i32_1 = arith.constant 0 : i32
    return %c0_i32, %c0_i32_0 : i32, i32
  }
  func.func @transform_3(%arg0: i32) -> (i32, i32) {
    %c0_i32 = arith.constant 0 : i32
    %c0_i32_0 = arith.constant 0 : i32
    %c0_i32_1 = arith.constant 0 : i32
    return %c0_i32, %c0_i32_0 : i32, i32
  }
  func.func @transform_4(%arg0: i32) -> (i32, i32) {
    %c0_i32 = arith.constant 0 : i32
    %c0_i32_0 = arith.constant 0 : i32
    %c0_i32_1 = arith.constant 0 : i32
    return %c0_i32, %c0_i32_0 : i32, i32
  }
  func.func @transform_5(%arg0: i32) -> (i32, i32) {
    %c0_i32 = arith.constant 0 : i32
    %c0_i32_0 = arith.constant 0 : i32
    return %arg0, %c0_i32 : i32, i32
  }
}

</mosaic_0001>

<llo_original>
// kernel: tpu_custom_call.1
$region0: #{tpu_custom_call.1}
  #allocation0 [shape = 'u32[]', space=smem, size = 0x4, offset = 0x4, fixed_abs, tag = 'smem constant byte address 0x4 - core index']
  #allocation1 [shape = 'u32[144,128]{1,0:T(1,128)}', space=vmem, size = 0x12000, scoped, tag = 'internal scratch']
  %s0 = inlined_call_operand.hbm [shape: bf16[256,128], index: 0, kind: input, shape index: {}]
  %s1 = inlined_call_operand.hbm [shape: bf16[128,128], index: 1, kind: input, shape index: {}]
  %s2 = inlined_call_operand.vmem [shape: f32[1,128], index: 2, kind: input, shape index: {}]
  %s3 = inlined_call_operand.hbm [shape: bf16[128,128], index: 3, kind: input, shape index: {}]
  %s4 = inlined_call_operand.vmem [shape: f32[1,128], index: 4, kind: input, shape index: {}]
  %s5 = inlined_call_operand.hbm [shape: f32[256,128], index: 5, kind: output, shape index: {}]
  %s6 = sld [smem:[#allocation0]]
  $region65: #{tpu_custom_call.1} parent=0
    _
  %s8 = ssub.s32 1, %s6
  %s9 = scalar_select 0, %s8, %s6
  $region1: #{tpu_custom_call.1} parent=0
    #allocation2 [shape = 'u8[32768]{0}', space=vmem, size = 0x8000, scoped, tag = 'input window, operand 0']
    #allocation3 [shape = 's32[2]{0}', space=sflag, size = 0x8, scoped, tag = 'scoped memory for tpu_custom_call.1']
    #allocation4 [shape = 's32[2]{0}', space=sflag, size = 0x8, scoped, tag = 'scoped memory for tpu_custom_call.1']
    #allocation5 [shape = 'u8[32768]{0}', space=vmem, size = 0x8000, scoped, tag = 'input window, operand 1, single buffered']
    #allocation6 [shape = 's32[1]{0}', space=sflag, size = 0x4, scoped, tag = 'scoped memory for tpu_custom_call.1']
    #allocation7 [shape = 'u8[32768]{0}', space=vmem, size = 0x8000, scoped, tag = 'input window, operand 3, single buffered']
    #allocation8 [shape = 'u8[65536]{0}', space=vmem, size = 0x10000, scoped, tag = 'output window, operand 0']
    %10 = vsyncpa [#allocation3], 0
    %s11 = scalar_lea.sflag [#allocation3], 1
    %12 = vsyncpa %s11, 0
    %13 = vsyncpa [#allocation6], 0
    %14 = vsyncpa [#allocation4], 0
    %s15 = scalar_lea.sflag [#allocation4], 1
    %16 = vsyncpa %s15, 0
    loop: start=0, step=1, limit=6
    $region2: #{tpu_custom_call.1} parent=1 // loop_pre_header
      _
    $region3: #{tpu_custom_call.1} parent=1 // loop_header
      %s18 = sphi 0, %s22
      %p19 = scmp.ge.s32.totalorder %s18, 6
      %s28 = sphi 0, %s30
      %s31 = sphi 0, %s28
      %s32 = sphi 0, %s31
      %s48 = sphi 0, %s32
      %s52 = sphi 0, %s52
      %s54 = sphi 0, %s52
      %s55 = sphi 0, %s54
      %s69 = sphi 0, %s55
      %s73 = sphi 0, %s73
      %s75 = sphi 0, %s73
      %s76 = sphi 0, %s75
      %s90 = sphi 0, %s76
      %s94 = sphi 0, %s94
      %s96 = sphi 0, %s94
      %s97 = sphi 0, %s96
      %s111 = sphi 0, %s97
      %s115 = sphi 0, %s115
      %s117 = sphi 0, %s115
      %s118 = sphi 0, %s117
      %s132 = sphi 0, %s118
      %s138 = sphi 0, %s140
      %s141 = sphi 0, %s138
      %s142 = sphi 0, %s141
      %s158 = sphi 0, %s142
    $region4: #{tpu_custom_call.1} parent=1 // loop_header_branch
      %21 = sbr.rel (%p19) target = $region8
    $region5: #{tpu_custom_call.1} parent=1 // loop_body
      %s23 = ssub.s32 %s18, 1
      %s24 = ssub.s32 %s18, 2
      %s25 = sadd.s32 %s18, 1
      %s26 = ssub.s32 %s18, %s25
      %p27 = scmp.eq.s32.totalorder %s26, 0
      %s29 = sadd.s32 %s28, 1
      %s30 = scalar_select %p27, %s28, %s29
      %p33 = pneg %p27
      %p34 = scmp.eq.s32.totalorder %s18, 3
      %p35 = por %p33, %p34
      %p36 = scmp.ne.s32.totalorder %s28, %s31
      %p37 = scmp.eq.s32.totalorder %s18, 0
      %p38 = por %p36, %p37
      %p39 = scmp.ne.s32.totalorder %s28, %s31
      %p40 = scmp.eq.s32.totalorder %s23, 3
      %p41 = por %p39, %p40
      %p42 = scmp.ne.s32.totalorder %s31, %s32
      %p43 = scmp.eq.s32.totalorder %s23, 0
      %p44 = por %p42, %p43
      %p45 = scmp.ne.s32.totalorder %s31, %s32
      %p46 = scmp.eq.s32.totalorder %s24, 3
      %p47 = por %p45, %p46
      %p49 = scmp.ne.s32.totalorder %s32, %s48
      %p50 = scmp.eq.s32.totalorder %s24, 0
      %p51 = por %p49, %p50
      %s53 = sadd.s32 %s52, 1
      %p56 = scmp.eq.s32.totalorder %s18, 3
      %p57 = scmp.ne.s32.totalorder %s52, %s54
      %p58 = scmp.eq.s32.totalorder %s18, 0
      %p59 = por %p57, %p58
      %p60 = scmp.ne.s32.totalorder %s52, %s54
      %p61 = scmp.eq.s32.totalorder %s23, 3
      %p62 = por %p60, %p61
      %p63 = scmp.ne.s32.totalorder %s54, %s55
      %p64 = scmp.eq.s32.totalorder %s23, 0
      %p65 = por %p63, %p64
      %p66 = scmp.ne.s32.totalorder %s54, %s55
      %p67 = scmp.eq.s32.totalorder %s24, 3
      %p68 = por %p66, %p67
      %p70 = scmp.ne.s32.totalorder %s55, %s69
      %p71 = scmp.eq.s32.totalorder %s24, 0
      %p72 = por %p70, %p71
      %s74 = sadd.s32 %s73, 1
      %p77 = scmp.eq.s32.totalorder %s18, 3
      %p78 = scmp.ne.s32.totalorder %s73, %s75
      %p79 = scmp.eq.s32.totalorder %s18, 0
      %p80 = por %p78, %p79
      %p81 = scmp.ne.s32.totalorder %s73, %s75
      %p82 = scmp.eq.s32.totalorder %s23, 3
      %p83 = por %p81, %p82
      %p84 = scmp.ne.s32.totalorder %s75, %s76
      %p85 = scmp.eq.s32.totalorder %s23, 0
      %p86 = por %p84, %p85
      %p87 = scmp.ne.s32.totalorder %s75, %s76
      %p88 = scmp.eq.s32.totalorder %s24, 3
      %p89 = por %p87, %p88
      %p91 = scmp.ne.s32.totalorder %s76, %s90
      %p92 = scmp.eq.s32.totalorder %s24, 0
      %p93 = por %p91, %p92
      %s95 = sadd.s32 %s94, 1
      %p98 = scmp.eq.s32.totalorder %s18, 3
      %p99 = scmp.ne.s32.totalorder %s94, %s96
      %p100 = scmp.eq.s32.totalorder %s18, 0
      %p101 = por %p99, %p100
      %p102 = scmp.ne.s32.totalorder %s94, %s96
      %p103 = scmp.eq.s32.totalorder %s23, 3
      %p104 = por %p102, %p103
      %p105 = scmp.ne.s32.totalorder %s96, %s97
      %p106 = scmp.eq.s32.totalorder %s23, 0
      %p107 = por %p105, %p106
      %p108 = scmp.ne.s32.totalorder %s96, %s97
      %p109 = scmp.eq.s32.totalorder %s24, 3
      %p110 = por %p108, %p109
      %p112 = scmp.ne.s32.totalorder %s97, %s111
      %p113 = scmp.eq.s32.totalorder %s24, 0
      %p114 = por %p112, %p113
      %s116 = sadd.s32 %s115, 1
      %p119 = scmp.eq.s32.totalorder %s18, 3
      %p120 = scmp.ne.s32.totalorder %s115, %s117
      %p121 = scmp.eq.s32.totalorder %s18, 0
      %p122 = por %p120, %p121
      %p123 = scmp.ne.s32.totalorder %s115, %s117
      %p124 = scmp.eq.s32.totalorder %s23, 3
      %p125 = por %p123, %p124
      %p126 = scmp.ne.s32.totalorder %s117, %s118
      %p127 = scmp.eq.s32.totalorder %s23, 0
      %p128 = por %p126, %p127
      %p129 = scmp.ne.s32.totalorder %s117, %s118
      %p130 = scmp.eq.s32.totalorder %s24, 3
      %p131 = por %p129, %p130
      %p133 = scmp.ne.s32.totalorder %s118, %s132
      %p134 = scmp.eq.s32.totalorder %s24, 0
      %p135 = por %p133, %p134
      %s136 = ssub.s32 %s18, %s25
      %p137 = scmp.eq.s32.totalorder %s136, 0
      %s139 = sadd.s32 %s138, 1
      %s140 = scalar_select %p137, %s138, %s139
      %p143 = pneg %p137
      %p144 = scmp.eq.s32.totalorder %s18, 3
      %p145 = por %p143, %p144
      %p146 = scmp.ne.s32.totalorder %s138, %s141
      %p147 = scmp.eq.s32.totalorder %s18, 0
      %p148 = por %p146, %p147
      %p149 = scmp.ne.s32.totalorder %s138, %s141
      %p150 = scmp.eq.s32.totalorder %s23, 3
      %p151 = por %p149, %p150
      %p152 = scmp.ne.s32.totalorder %s141, %s142
      %p153 = scmp.eq.s32.totalorder %s23, 0
      %p154 = por %p152, %p153
      %p155 = scmp.ne.s32.totalorder %s141, %s142
      %p156 = scmp.eq.s32.totalorder %s24, 3
      %p157 = por %p155, %p156
      %p159 = scmp.ne.s32.totalorder %s142, %s158
      %p160 = scmp.eq.s32.totalorder %s24, 0
      %p161 = por %p159, %p160
      %p162 = scmp.le.s32.totalorder 1, %s18
      %p163 = scmp.lt.s32.totalorder %s18, 5
      %p164 = pnand %p162, %p163
      %p165 = pneg %p164
      // Predicated region
      $region9: #{tpu_custom_call.1} parent=5 // pred_check
        _
      $region10: #{tpu_custom_call.1} parent=5 // pred_check_branch
        %167 = sbr.rel (%p164) target = $region12
      $region11: #{tpu_custom_call.1} parent=5 // pred_region
        %s168 = ssub.s32 %s18, 1
        // Predicated region
        $region13: #{tpu_custom_call.1} parent=11 // pred_check
          %p169 = pneg %p65
        $region14: #{tpu_custom_call.1} parent=11 // pred_check_branch
          %171 = sbr.rel (%p169) target = $region16
        $region15: #{tpu_custom_call.1} parent=11 // pred_region
          %s173 = ssub.s32 1024, 1024
          %174 = vsyncadd [#allocation6], %s173
          %s175 = sshll.u32 [#allocation5], 4
          %s176 = int_to_ptr.vmem [resolvable:$true] %s175
          %181 = dma.hbm_to_vmem [thread:$0]  %s1, 1024, %s176, [#allocation6], 64, 64, 4
        $region16: #{tpu_custom_call.1} parent=11 // pred_fallthru
          _
        // Predicated region
        $region17: #{tpu_custom_call.1} parent=11 // pred_check
          %p182 = pneg %p86
        $region18: #{tpu_custom_call.1} parent=11 // pred_check_branch
          %184 = sbr.rel (%p182) target = $region20
        $region19: #{tpu_custom_call.1} parent=11 // pred_region
          _
        $region20: #{tpu_custom_call.1} parent=11 // pred_fallthru
          _
        // Predicated region
        $region21: #{tpu_custom_call.1} parent=11 // pred_check
          %p185 = pneg %p107
        $region22: #{tpu_custom_call.1} parent=11 // pred_check_branch
          %187 = sbr.rel (%p185) target = $region24
        $region23: #{tpu_custom_call.1} parent=11 // pred_region
          %s189 = ssub.s32 1024, 1024
          %190 = vsyncadd [#allocation6], %s189
          %s191 = sshll.u32 [#allocation7], 4
          %s192 = int_to_ptr.vmem [resolvable:$true] %s191
          %197 = dma.hbm_to_vmem [thread:$0]  %s3, 1024, %s192, [#allocation6], 64, 64, 4
        $region24: #{tpu_custom_call.1} parent=11 // pred_fallthru
          _
        // Predicated region
        $region25: #{tpu_custom_call.1} parent=11 // pred_check
          %p198 = pneg %p128
        $region26: #{tpu_custom_call.1} parent=11 // pred_check_branch
          %200 = sbr.rel (%p198) target = $region28
        $region27: #{tpu_custom_call.1} parent=11 // pred_region
          _
        $region28: #{tpu_custom_call.1} parent=11 // pred_fallthru
          _
      $region12: #{tpu_custom_call.1} parent=5 // pred_fallthru
        _
      %p201 = scmp.lt.s32.totalorder %s18, 4
      // Predicated region
      $region29: #{tpu_custom_call.1} parent=5 // pred_check
        %p202 = pneg %p201
      $region30: #{tpu_custom_call.1} parent=5 // pred_check_branch
        %204 = sbr.rel (%p202) target = $region32
      $region31: #{tpu_custom_call.1} parent=5 // pred_region
        // Predicated region
        $region33: #{tpu_custom_call.1} parent=31 // pred_check
          %p205 = pneg %p38
        $region34: #{tpu_custom_call.1} parent=31 // pred_check_branch
          %207 = sbr.rel (%p205) target = $region36
        $region35: #{tpu_custom_call.1} parent=31 // pred_region
          %s208 = sand.u32 %s28, 1
          %s209 = scalar_lea.sflag [#allocation3], %s208
          %s210 = sand.u32 %s28, 1
          %s211 = smul.addr %s210, 32
          %s212 = scalar_lea.vmem [#allocation2], %s211
          %s213 = smul.u32 8, %s18
          %s215 = ssub.s32 512, 512
          %216 = vsyncadd %s209, %s215
          %s217 = smul.addr %s213, 64
          %s218 = scalar_lea.hbm %s0, %s217
          %s219 = sshll.u32 %s212, 4
          %s220 = int_to_ptr.vmem [resolvable:$true] %s219
          %225 = dma.hbm_to_vmem [thread:$0]  %s218, 512, %s220, %s209, 64, 64, 4
        $region36: #{tpu_custom_call.1} parent=31 // pred_fallthru
          _
      $region32: #{tpu_custom_call.1} parent=5 // pred_fallthru
        _
      %p226 = scmp.le.s32.totalorder 1, %s18
      %p227 = scmp.lt.s32.totalorder %s18, 5
      %p228 = pnand %p226, %p227
      %p229 = pneg %p228
      // Predicated region
      $region37: #{tpu_custom_call.1} parent=5 // pred_check
        _
      $region38: #{tpu_custom_call.1} parent=5 // pred_check_branch
        %231 = sbr.rel (%p228) target = $region40
      $region39: #{tpu_custom_call.1} parent=5 // pred_region
        %s232 = ssub.s32 %s18, 1
        %s233 = sand.u32 %s31, 1
        %s234 = scalar_lea.sflag [#allocation3], %s233
        %s235 = sand.u32 %s31, 1
        %s236 = smul.addr %s235, 32
        %s237 = scalar_lea.vmem [#allocation2], %s236
        // Predicated region
        $region41: #{tpu_custom_call.1} parent=39 // pred_check
          %p238 = pneg %p44
        $region42: #{tpu_custom_call.1} parent=39 // pred_check_branch
          %240 = sbr.rel (%p238) target = $region44
        $region43: #{tpu_custom_call.1} parent=39 // pred_region
          %241 = dma.done %s234, 512
        $region44: #{tpu_custom_call.1} parent=39 // pred_fallthru
          _
        // Predicated region
        $region45: #{tpu_custom_call.1} parent=39 // pred_check
          %p242 = pneg %p65
        $region46: #{tpu_custom_call.1} parent=39 // pred_check_branch
          %244 = sbr.rel (%p242) target = $region48
        $region47: #{tpu_custom_call.1} parent=39 // pred_region
          %245 = dma.done [#allocation6], 1024
        $region48: #{tpu_custom_call.1} parent=39 // pred_fallthru
          _
        // Predicated region
        $region49: #{tpu_custom_call.1} parent=39 // pred_check
          %p246 = pneg %p107
        $region50: #{tpu_custom_call.1} parent=39 // pred_check_branch
          %248 = sbr.rel (%p246) target = $region52
        $region51: #{tpu_custom_call.1} parent=39 // pred_region
          %249 = dma.done [#allocation6], 1024
        $region52: #{tpu_custom_call.1} parent=39 // pred_fallthru
          _
        %s250 = sand.u32 %s31, 1
        %s251 = scalar_lea.sflag [#allocation3], %s250
        %s252 = sand.u32 %s31, 1
        %s253 = smul.addr %s252, 32
        %s254 = scalar_lea.vmem [#allocation2], %s253
        %p255 = pneg %p44
        %p256 = pneg %p41
        %p257 = pneg %p65
        %p258 = pneg %p62
        %p259 = pneg %p86
        %p260 = pneg %p83
        %p261 = pneg %p107
        %p262 = pneg %p104
        %p263 = pneg %p128
        %p264 = pneg %p125
        %p265 = pneg %p154
        %p266 = pneg %p151
        %s267 = sand.u32 %s141, 1
        %s268 = scalar_lea.sflag [#allocation4], %s267
        %s269 = sand.u32 %s141, 1
        %s270 = smul.addr %s269, 64
        %s271 = scalar_lea.vmem [#allocation8], %s270
        %s272 = smul.u32 8, %s23
        %s273 = smul.u32 8, %s23
        %v275 = vld [vmem:[%s237] sm:$0xf]
        %v276 = vld [vmem:[%s237 + $0x4] sm:$0xf]
        %v277 = vld [vmem:[%s237 + $0x8] sm:$0xf]
        %v278 = vld [vmem:[%s237 + $0xc] sm:$0xf]
        %v279 = vld [vmem:[%s237 + $0x10] sm:$0xf]
        %v280 = vld [vmem:[%s237 + $0x14] sm:$0xf]
        %v281 = vld [vmem:[%s237 + $0x18] sm:$0xf]
        %v282 = vld [vmem:[%s237 + $0x1c] sm:$0xf]
        %v283 = vld [vmem:[#allocation5] sm:$0xf]
        %v284 = vld [vmem:[#allocation5 + $0x4] sm:$0xf]
        %v285 = vld [vmem:[#allocation5 + $0x8] sm:$0xf]
        %v286 = vld [vmem:[#allocation5 + $0xc] sm:$0xf]
        %v287 = vld [vmem:[#allocation5 + $0x10] sm:$0xf]
        %v288 = vld [vmem:[#allocation5 + $0x14] sm:$0xf]
        %v289 = vld [vmem:[#allocation5 + $0x18] sm:$0xf]
        %v290 = vld [vmem:[#allocation5 + $0x1c] sm:$0xf]
        %v291 = vld [vmem:[#allocation5 + $0x20] sm:$0xf]
        %v292 = vld [vmem:[#allocation5 + $0x24] sm:$0xf]
        %v293 = vld [vmem:[#allocation5 + $0x28] sm:$0xf]
        %v294 = vld [vmem:[#allocation5 + $0x2c] sm:$0xf]
        %v295 = vld [vmem:[#allocation5 + $0x30] sm:$0xf]
        %v296 = vld [vmem:[#allocation5 + $0x34] sm:$0xf]
        %v297 = vld [vmem:[#allocation5 + $0x38] sm:$0xf]
        %v298 = vld [vmem:[#allocation5 + $0x3c] sm:$0xf]
        %v299 = vld [vmem:[%s2] sm:$0x1]
        %v301 = vlaneseq
        %v302 = vshrl.u32 %v301, 7
        %v303 = vsub.s32 0, %v302
        %v304 = vrot.slane %v299, %v303
        %v314 = vunpack.c.l.b16 %v275
        %v315 = vunpack.c.l.b16 %v276
        %v316 = vunpack.c.l.b16 %v277
        %v317 = vunpack.c.l.b16 %v278
        %v318 = vunpack.c.l.b16 %v279
        %v319 = vunpack.c.l.b16 %v280
        %v320 = vunpack.c.l.b16 %v281
        %v321 = vunpack.c.l.b16 %v282
        %v322 = vpack.c.b16 %v315, %v314
        %v323 = vpack.c.b16 %v317, %v316
        %v324 = vpack.c.b16 %v319, %v318
        %v325 = vpack.c.b16 %v321, %v320
        %v346 = vunpack.c.l.b16 %v283
        %v347 = vunpack.c.l.b16 %v284
        %v348 = vunpack.c.l.b16 %v285
        %v349 = vunpack.c.l.b16 %v286
        %v350 = vunpack.c.l.b16 %v287
        %v351 = vunpack.c.l.b16 %v288
        %v352 = vunpack.c.l.b16 %v289
        %v353 = vunpack.c.l.b16 %v290
        %v354 = vunpack.c.l.b16 %v291
        %v355 = vunpack.c.l.b16 %v292
        %v356 = vunpack.c.l.b16 %v293
        %v357 = vunpack.c.l.b16 %v294
        %v358 = vunpack.c.l.b16 %v295
        %v359 = vunpack.c.l.b16 %v296
        %v360 = vunpack.c.l.b16 %v297
        %v361 = vunpack.c.l.b16 %v298
        %v362 = vpack.c.b16 %v347, %v346
        %v363 = vpack.c.b16 %v349, %v348
        %v364 = vpack.c.b16 %v351, %v350
        %v365 = vpack.c.b16 %v353, %v352
        %v366 = vpack.c.b16 %v355, %v354
        %v367 = vpack.c.b16 %v357, %v356
        %v368 = vpack.c.b16 %v359, %v358
        %v369 = vpack.c.b16 %v361, %v360
        %378 = vmatprep.subr.bf16.mxu0 0
        %379 = vmatpush1.bf16.msra.mxu0 %v369
        %380 = vmatprep.subr.bf16.mxu0 0
        %381 = vmatpush1.bf16.msra.mxu0 %v368
        %382 = vmatprep.subr.bf16.mxu0 0
        %383 = vmatpush1.bf16.msra.mxu0 %v367
        %384 = vmatprep.subr.bf16.mxu0 0
        %385 = vmatpush1.bf16.msra.mxu0 %v366
        %386 = vmatprep.subr.bf16.mxu0 0
        %387 = vmatpush1.bf16.msra.mxu0 %v365
        %388 = vmatprep.subr.bf16.mxu0 0
        %389 = vmatpush1.bf16.msra.mxu0 %v364
        %390 = vmatprep.subr.bf16.mxu0 0
        %391 = vmatpush1.bf16.msra.mxu0 %v363
        %392 = vmatprep.subr.bf16.mxu0 0
        %393 = vmatpush1.bf16.msra.mxu0 %v362
        %394 = vmatprep.subr.bf16.mxu0 0
        %395 = vmatpush2.bf16.msra.mxu0 0
        %396 = vmatprep.subr.bf16.mxu0 0
        %397 = vmatpush2.bf16.msra.mxu0 0
        %398 = vmatprep.subr.bf16.mxu0 0
        %399 = vmatpush2.bf16.msra.mxu0 0
        %400 = vmatprep.subr.bf16.mxu0 0
        %401 = vmatpush2.bf16.msra.mxu0 0
        %402 = vmatprep.subr.bf16.mxu0 0
        %403 = vmatpush2.bf16.msra.mxu0 0
        %404 = vmatprep.subr.bf16.mxu0 0
        %405 = vmatpush2.bf16.msra.mxu0 0
        %406 = vmatprep.subr.bf16.mxu0 0
        %407 = vmatpush2.bf16.msra.mxu0 0
        %408 = vmatprep.subr.bf16.mxu0 0
        %409 = vmatpush2.bf16.msra.mxu0 0
        %410 = vmatprep.mubr.bf16.mxu0 0
        %411 = vmatmul.mubr.bf16.gmra.mxu0 %v322
        %v412 = vpop.f32.mrf.mxu0
        %v413 = vadd.f32 %v304, %v412
        %v414 = vpop.f32.mrf.mxu0
        %v415 = vpop.f32.mrf.mxu0
        %v416 = vadd.f32 %v304, %v415
        %v417 = vpop.f32.mrf.mxu0
        %418 = vmatprep.mubr.bf16.mxu0 0
        %419 = vmatmul.mubr.bf16.gmra.mxu0 %v323
        %v420 = vpop.f32.mrf.mxu0
        %v421 = vadd.f32 %v304, %v420
        %v422 = vpop.f32.mrf.mxu0
        %v423 = vpop.f32.mrf.mxu0
        %v424 = vadd.f32 %v304, %v423
        %v425 = vpop.f32.mrf.mxu0
        %426 = vmatprep.mubr.bf16.mxu0 0
        %427 = vmatmul.mubr.bf16.gmra.mxu0 %v324
        %v428 = vpop.f32.mrf.mxu0
        %v429 = vadd.f32 %v304, %v428
        %v430 = vpop.f32.mrf.mxu0
        %v431 = vpop.f32.mrf.mxu0
        %v432 = vadd.f32 %v304, %v431
        %v433 = vpop.f32.mrf.mxu0
        %434 = vmatprep.mubr.bf16.mxu0 0
        %435 = vmatmul.mubr.bf16.gmra.mxu0 %v325
        %v436 = vpop.f32.mrf.mxu0
        %v437 = vadd.f32 %v304, %v436
        %v438 = vpop.f32.mrf.mxu0
        %v439 = vpop.f32.mrf.mxu0
        %v440 = vadd.f32 %v304, %v439
        %v441 = vpop.f32.mrf.mxu0
        %442 = vdwg.mxu0
        %v443 = vsub.f32 0.0, %v413
        %v444 = vsub.f32 0.0, %v416
        %v445 = vsub.f32 0.0, %v421
        %v446 = vsub.f32 0.0, %v424
        %v447 = vsub.f32 0.0, %v429
        %v448 = vsub.f32 0.0, %v432
        %v449 = vsub.f32 0.0, %v437
        %v450 = vsub.f32 0.0, %v440
        %v451 = vmul.f32 %v443, 1.442695
        %v452 = vpow.pop %v451
        %v453 = vmul.f32 %v444, 1.442695
        %v454 = vpow.pop %v453
        %v455 = vmul.f32 %v445, 1.442695
        %v456 = vpow.pop %v455
        %v457 = vmul.f32 %v446, 1.442695
        %v458 = vpow.pop %v457
        %v459 = vmul.f32 %v447, 1.442695
        %v460 = vpow.pop %v459
        %v461 = vmul.f32 %v448, 1.442695
        %v462 = vpow.pop %v461
        %v463 = vmul.f32 %v449, 1.442695
        %v464 = vpow.pop %v463
        %v465 = vmul.f32 %v450, 1.442695
        %v466 = vpow.pop %v465
        %v467 = vadd.f32 %v452, 1.0
        %v468 = vadd.f32 %v454, 1.0
        %v469 = vadd.f32 %v456, 1.0
        %v470 = vadd.f32 %v458, 1.0
        %v471 = vadd.f32 %v460, 1.0
        %v472 = vadd.f32 %v462, 1.0
        %v473 = vadd.f32 %v464, 1.0
        %v474 = vadd.f32 %v466, 1.0
        %v475 = vrcp.pop %v467
        %v476 = vrcp.pop %v468
        %v477 = vrcp.pop %v469
        %v478 = vrcp.pop %v470
        %v479 = vrcp.pop %v471
        %v480 = vrcp.pop %v472
        %v481 = vrcp.pop %v473
        %v482 = vrcp.pop %v474
        %v483 = vpack.c.bf16 %v476, %v475
        %v484 = vpack.c.bf16 %v478, %v477
        %v485 = vpack.c.bf16 %v480, %v479
        %v486 = vpack.c.bf16 %v482, %v481
        %v487 = vld [vmem:[#allocation7] sm:$0xf]
        %v488 = vld [vmem:[#allocation7 + $0x4] sm:$0xf]
        %v489 = vld [vmem:[#allocation7 + $0x8] sm:$0xf]
        %v490 = vld [vmem:[#allocation7 + $0xc] sm:$0xf]
        %v491 = vld [vmem:[#allocation7 + $0x10] sm:$0xf]
        %v492 = vld [vmem:[#allocation7 + $0x14] sm:$0xf]
        %v493 = vld [vmem:[#allocation7 + $0x18] sm:$0xf]
        %v494 = vld [vmem:[#allocation7 + $0x1c] sm:$0xf]
        %v495 = vld [vmem:[#allocation7 + $0x20] sm:$0xf]
        %v496 = vld [vmem:[#allocation7 + $0x24] sm:$0xf]
        %v497 = vld [vmem:[#allocation7 + $0x28] sm:$0xf]
        %v498 = vld [vmem:[#allocation7 + $0x2c] sm:$0xf]
        %v499 = vld [vmem:[#allocation7 + $0x30] sm:$0xf]
        %v500 = vld [vmem:[#allocation7 + $0x34] sm:$0xf]
        %v501 = vld [vmem:[#allocation7 + $0x38] sm:$0xf]
        %v502 = vld [vmem:[#allocation7 + $0x3c] sm:$0xf]
        %v503 = vld [vmem:[%s4] sm:$0x1]
        %v505 = vlaneseq
        %v506 = vshrl.u32 %v505, 7
        %v507 = vsub.s32 0, %v506
        %v508 = vrot.slane %v503, %v507
        %v526 = vunpack.c.l.b16 %v487
        %v527 = vunpack.c.l.b16 %v488
        %v528 = vunpack.c.l.b16 %v489
        %v529 = vunpack.c.l.b16 %v490
        %v530 = vunpack.c.l.b16 %v491
        %v531 = vunpack.c.l.b16 %v492
        %v532 = vunpack.c.l.b16 %v493
        %v533 = vunpack.c.l.b16 %v494
        %v534 = vunpack.c.l.b16 %v495
        %v535 = vunpack.c.l.b16 %v496
        %v536 = vunpack.c.l.b16 %v497
        %v537 = vunpack.c.l.b16 %v498
        %v538 = vunpack.c.l.b16 %v499
        %v539 = vunpack.c.l.b16 %v500
        %v540 = vunpack.c.l.b16 %v501
        %v541 = vunpack.c.l.b16 %v502
        %v542 = vpack.c.b16 %v527, %v526
        %v543 = vpack.c.b16 %v529, %v528
        %v544 = vpack.c.b16 %v531, %v530
        %v545 = vpack.c.b16 %v533, %v532
        %v546 = vpack.c.b16 %v535, %v534
        %v547 = vpack.c.b16 %v537, %v536
        %v548 = vpack.c.b16 %v539, %v538
        %v549 = vpack.c.b16 %v541, %v540
        %558 = vmatprep.subr.bf16.mxu0 0
        %559 = vmatpush1.bf16.msra.mxu0 %v549
        %560 = vmatprep.subr.bf16.mxu0 0
        %561 = vmatpush1.bf16.msra.mxu0 %v548
        %562 = vmatprep.subr.bf16.mxu0 0
        %563 = vmatpush1.bf16.msra.mxu0 %v547
        %564 = vmatprep.subr.bf16.mxu0 0
        %565 = vmatpush1.bf16.msra.mxu0 %v546
        %566 = vmatprep.subr.bf16.mxu0 0
        %567 = vmatpush1.bf16.msra.mxu0 %v545
        %568 = vmatprep.subr.bf16.mxu0 0
        %569 = vmatpush1.bf16.msra.mxu0 %v544
        %570 = vmatprep.subr.bf16.mxu0 0
        %571 = vmatpush1.bf16.msra.mxu0 %v543
        %572 = vmatprep.subr.bf16.mxu0 0
        %573 = vmatpush1.bf16.msra.mxu0 %v542
        %574 = vmatprep.subr.bf16.mxu0 0
        %575 = vmatpush2.bf16.msra.mxu0 0
        %576 = vmatprep.subr.bf16.mxu0 0
        %577 = vmatpush2.bf16.msra.mxu0 0
        %578 = vmatprep.subr.bf16.mxu0 0
        %579 = vmatpush2.bf16.msra.mxu0 0
        %580 = vmatprep.subr.bf16.mxu0 0
        %581 = vmatpush2.bf16.msra.mxu0 0
        %582 = vmatprep.subr.bf16.mxu0 0
        %583 = vmatpush2.bf16.msra.mxu0 0
        %584 = vmatprep.subr.bf16.mxu0 0
        %585 = vmatpush2.bf16.msra.mxu0 0
        %586 = vmatprep.subr.bf16.mxu0 0
        %587 = vmatpush2.bf16.msra.mxu0 0
        %588 = vmatprep.subr.bf16.mxu0 0
        %589 = vmatpush2.bf16.msra.mxu0 0
        %590 = vmatprep.mubr.bf16.mxu0 0
        %591 = vmatmul.mubr.bf16.gmra.mxu0 %v483
        %v592 = vpop.f32.mrf.mxu0
        %v593 = vadd.f32 %v508, %v592
        %v594 = vpop.f32.mrf.mxu0
        %v595 = vpop.f32.mrf.mxu0
        %v596 = vadd.f32 %v508, %v595
        %v597 = vpop.f32.mrf.mxu0
        %598 = vmatprep.mubr.bf16.mxu0 0
        %599 = vmatmul.mubr.bf16.gmra.mxu0 %v484
        %v600 = vpop.f32.mrf.mxu0
        %v601 = vadd.f32 %v508, %v600
        %v602 = vpop.f32.mrf.mxu0
        %v603 = vpop.f32.mrf.mxu0
        %v604 = vadd.f32 %v508, %v603
        %v605 = vpop.f32.mrf.mxu0
        %606 = vmatprep.mubr.bf16.mxu0 0
        %607 = vmatmul.mubr.bf16.gmra.mxu0 %v485
        %v608 = vpop.f32.mrf.mxu0
        %v609 = vadd.f32 %v508, %v608
        %v610 = vpop.f32.mrf.mxu0
        %v611 = vpop.f32.mrf.mxu0
        %v612 = vadd.f32 %v508, %v611
        %v613 = vpop.f32.mrf.mxu0
        %614 = vmatprep.mubr.bf16.mxu0 0
        %615 = vmatmul.mubr.bf16.gmra.mxu0 %v486
        %v616 = vpop.f32.mrf.mxu0
        %v617 = vadd.f32 %v508, %v616
        %v618 = vpop.f32.mrf.mxu0
        %v619 = vpop.f32.mrf.mxu0
        %v620 = vadd.f32 %v508, %v619
        %v621 = vpop.f32.mrf.mxu0
        %622 = vdwg.mxu0
        %v623 = vsub.f32 0.0, %v593
        %v624 = vsub.f32 0.0, %v596
        %v625 = vsub.f32 0.0, %v601
        %v626 = vsub.f32 0.0, %v604
        %v627 = vsub.f32 0.0, %v609
        %v628 = vsub.f32 0.0, %v612
        %v629 = vsub.f32 0.0, %v617
        %v630 = vsub.f32 0.0, %v620
        %v631 = vmul.f32 %v623, 1.442695
        %v632 = vpow.pop %v631
        %v633 = vmul.f32 %v624, 1.442695
        %v634 = vpow.pop %v633
        %v635 = vmul.f32 %v625, 1.442695
        %v636 = vpow.pop %v635
        %v637 = vmul.f32 %v626, 1.442695
        %v638 = vpow.pop %v637
        %v639 = vmul.f32 %v627, 1.442695
        %v640 = vpow.pop %v639
        %v641 = vmul.f32 %v628, 1.442695
        %v642 = vpow.pop %v641
        %v643 = vmul.f32 %v629, 1.442695
        %v644 = vpow.pop %v643
        %v645 = vmul.f32 %v630, 1.442695
        %v646 = vpow.pop %v645
        %v647 = vadd.f32 %v632, 1.0
        %v648 = vadd.f32 %v634, 1.0
        %v649 = vadd.f32 %v636, 1.0
        %v650 = vadd.f32 %v638, 1.0
        %v651 = vadd.f32 %v640, 1.0
        %v652 = vadd.f32 %v642, 1.0
        %v653 = vadd.f32 %v644, 1.0
        %v654 = vadd.f32 %v646, 1.0
        %v655 = vrcp.pop %v647
        %v656 = vrcp.pop %v648
        %v657 = vrcp.pop %v649
        %v658 = vrcp.pop %v650
        %v659 = vrcp.pop %v651
        %v660 = vrcp.pop %v652
        %v661 = vrcp.pop %v653
        %v662 = vrcp.pop %v654
        %663 = vst [vmem:[%s271] sm:$0xff] %v655
        %664 = vst [vmem:[%s271 + $0x8] sm:$0xff] %v656
        %665 = vst [vmem:[%s271 + $0x10] sm:$0xff] %v657
        %666 = vst [vmem:[%s271 + $0x18] sm:$0xff] %v658
        %667 = vst [vmem:[%s271 + $0x20] sm:$0xff] %v659
        %668 = vst [vmem:[%s271 + $0x28] sm:$0xff] %v660
        %669 = vst [vmem:[%s271 + $0x30] sm:$0xff] %v661
        %670 = vst [vmem:[%s271 + $0x38] sm:$0xff] %v662
        %s671 = sand.u32 %s141, 1
        %s672 = scalar_lea.sflag [#allocation4], %s671
        %s673 = sand.u32 %s141, 1
        %s674 = smul.addr %s673, 64
        %s675 = scalar_lea.vmem [#allocation8], %s674
        // Predicated region
        $region53: #{tpu_custom_call.1} parent=39 // pred_check
          %p676 = pneg %p151
        $region54: #{tpu_custom_call.1} parent=39 // pred_check_branch
          %678 = sbr.rel (%p676) target = $region56
        $region55: #{tpu_custom_call.1} parent=39 // pred_region
          %s679 = smul.u32 8, %s23
          %s681 = ssub.s32 1024, 1024
          %682 = vsyncadd %s672, %s681
          %s683 = smul.addr %s679, 128
          %s684 = scalar_lea.hbm %s5, %s683
          %s685 = sshll.u32 %s675, 4
          %s686 = int_to_ptr.vmem [resolvable:$true] %s685
          %691 = dma.vmem_to_hbm [thread:$0]  %s686, 1024, %s684, %s672, 128, 128, 8
        $region56: #{tpu_custom_call.1} parent=39 // pred_fallthru
          _
      $region40: #{tpu_custom_call.1} parent=5 // pred_fallthru
        _
      %p692 = scmp.le.s32.totalorder 2, %s18
      // Predicated region
      $region57: #{tpu_custom_call.1} parent=5 // pred_check
        %p693 = pneg %p692
      $region58: #{tpu_custom_call.1} parent=5 // pred_check_branch
        %695 = sbr.rel (%p693) target = $region60
      $region59: #{tpu_custom_call.1} parent=5 // pred_region
        %s696 = ssub.s32 %s18, 2
        // Predicated region
        $region61: #{tpu_custom_call.1} parent=59 // pred_check
          %p697 = pneg %p157
        $region62: #{tpu_custom_call.1} parent=59 // pred_check_branch
          %699 = sbr.rel (%p697) target = $region64
        $region63: #{tpu_custom_call.1} parent=59 // pred_region
          %s700 = sand.u32 %s142, 1
          %s701 = scalar_lea.sflag [#allocation4], %s700
          %s702 = sand.u32 %s142, 1
          %s703 = smul.addr %s702, 64
          %s704 = scalar_lea.vmem [#allocation8], %s703
          %705 = dma.done %s701, 1024
        $region64: #{tpu_custom_call.1} parent=59 // pred_fallthru
          _
      $region60: #{tpu_custom_call.1} parent=5 // pred_fallthru
        _
    $region6: #{tpu_custom_call.1} parent=1 // loop_footer
      %s22 = sadd.s32 1, %s18
    $region7: #{tpu_custom_call.1} parent=1 // loop_footer_branch
      %17 = sbr.rel target = $region3
    $region8: #{tpu_custom_call.1} parent=1 // loop_exit
      _
    %706 = vsyncpa [#allocation3], 1
    %s707 = scalar_lea.sflag [#allocation3], 1
    %708 = vsyncpa %s707, 1
    %709 = vsyncpa [#allocation6], 1
    %710 = vsyncpa [#allocation4], 1
    %s711 = scalar_lea.sflag [#allocation4], 1
    %712 = vsyncpa %s711, 1

</llo_original>
